<compile_context>
chip_gen: v7x
topology: tpu7x:2x2x1
jax: 0.10.0
libtpu: 0.0.40
codegen_flags: <defaults>
</compile_context>

<pallas_src>
import jax
import jax.numpy as jnp
from jax.experimental import pallas as pl
from jax.experimental.pallas import tpu as pltpu


def _round_up(x: int, m: int) -> int:
    return ((x + m - 1) // m) * m


# --------------------------------------------------------------------------- #
# One-time parameter preparation (hoisted out of the forward path).
# --------------------------------------------------------------------------- #
def prepare_params(params, bn_params=None, param_dtype=jnp.bfloat16):
    """params: list of (W [in, out] f32, b [out] f32) per Linear layer.
       bn_params: optional (gamma [in], beta [in]) for training-mode BatchNorm1d.
       Returns kernel-ready arrays + static metadata (done ONCE at init)."""
    n_layers = len(params)
    out_dim = int(params[-1][0].shape[1])
    out_pad = _round_up(max(out_dim, 128), 128)

    weights, out_widths, in_widths = [], [], []
    for i, (w, _) in enumerate(params):
        if i == n_layers - 1 and w.shape[1] != out_pad:
            # Zero-pad the final layer's output width -> lane-dense output store.
            w = jnp.zeros((w.shape[0], out_pad), w.dtype).at[:, : w.shape[1]].set(w)
        weights.append(w.astype(param_dtype))
        in_widths.append(int(w.shape[0]))
        out_widths.append(int(w.shape[1]))

    # Single bias slab: one DMA instead of n_layers tiny [1, out] inputs.
    w_max = _round_up(max(out_widths), 128)
    biases = jnp.zeros((n_layers, w_max), jnp.float32)
    for i, (_, b) in enumerate(params):
        biases = biases.at[i, : b.shape[0]].set(b.astype(jnp.float32))

    gamma = beta = None
    if bn_params is not None:
        g, bt = bn_params
        gamma = jnp.asarray(g, jnp.float32).reshape(1, -1)
        beta = jnp.asarray(bt, jnp.float32).reshape(1, -1)

    return dict(
        weights=tuple(weights),
        biases=biases,
        gamma=gamma,
        beta=beta,
        out_dim=out_dim,
        out_pad=out_pad,
        out_widths=tuple(out_widths),
        in_widths=tuple(in_widths),
    )


# --------------------------------------------------------------------------- #
# Kernel body (closed over the static layer structure).
# --------------------------------------------------------------------------- #
def _make_mlp_kernel(n_layers, out_widths, use_bn, n_real_batch):
    def kernel(*refs):
        idx = 0
        if use_bn:
            gamma_ref, beta_ref = refs[0], refs[1]
            idx = 2
        x_ref = refs[idx]
        b_ref = refs[idx + 1]
        w_refs = refs[idx + 2: idx + 2 + n_layers]
        o_ref = refs[idx + 2 + n_layers]

        h = x_ref[...].astype(jnp.float32)

        if use_bn:
            # Training-mode BatchNorm1d (biased batch variance), single pass:
            # var = E[x^2] - mean^2.  Padded batch rows are zero, so the sums only
            # see real rows; divide by the true batch size closed over statically.
            inv_n = 1.0 / float(n_real_batch)
            s1 = jnp.sum(h, axis=0, keepdims=True)
            s2 = jnp.sum(h * h, axis=0, keepdims=True)
            mean = s1 * inv_n
            var = s2 * inv_n - mean * mean
            h = (h - mean) * jax.lax.rsqrt(var + 1e-5)
            h = h * gamma_ref[...] + beta_ref[...]

        for layer in range(n_layers):
            w = w_refs[layer][...]
            bias = b_ref[layer: layer + 1, : out_widths[layer]]      # [1, out_l] f32
            h = jnp.dot(h.astype(w.dtype), w,
                        preferred_element_type=jnp.float32) + bias   # f32 accumulate
            if layer < n_layers - 1:            # ReLU after hidden Linears only
                h = jnp.maximum(h, 0.0)

        o_ref[...] = h.astype(o_ref.dtype)

    return kernel


# --------------------------------------------------------------------------- #
# Forward wrapper: batch-tiled 1-D grid, weights VMEM-resident.
# --------------------------------------------------------------------------- #
def simple_mlp_forward(x, prepared, *, batch_tile=512):
    assert batch_tile % 8 == 0, "batch_tile must be a multiple of 8 (sublane)"
    weights = prepared["weights"]
    biases = prepared["biases"]
    gamma, beta = prepared["gamma"], prepared["beta"]
    use_bn = gamma is not None
    n_layers = len(weights)
    out_dim, out_pad = prepared["out_dim"], prepared["out_pad"]
    out_widths, in_widths = prepared["out_widths"], prepared["in_widths"]

    batch, input_dim = x.shape
    assert input_dim == in_widths[0]

    if use_bn:
        bt = _round_up(batch, 8)                 # BN needs full-batch stats
    else:
        bt = min(_round_up(batch, 8), batch_tile)
    batch_pad = _round_up(batch, bt)
    if batch_pad != batch:
        x = jnp.pad(x, ((0, batch_pad - batch), (0, 0)))
    grid = (batch_pad // bt,)

    # ---- VMEM guardrail (v7x: 64 MiB physical / 32 MiB default scoped) -------
    param_bytes = sum(w.size * w.dtype.itemsize for w in weights)
    param_bytes += biases.size * biases.dtype.itemsize
    if use_bn:
        param_bytes += (gamma.size + beta.size) * 4
    io_bytes = 2 * bt * (input_dim + out_pad) * 4            # double-buffered x/out
    act_bytes = 2 * bt * max(max(out_widths), input_dim) * 4  # intermediate h
    vmem_needed = 2 * param_bytes + io_bytes + act_bytes
    assert vmem_needed < (48 << 20), \
        "MLP tile does not fit TPU VMEM; lower batch_tile or tile layers"
    vmem_limit = int(min(64 << 20, max(4 * vmem_needed, 32 << 20)))

    # ---- specs ---------------------------------------------------------------
    resident = lambda i: (0, 0)      # same block every step -> stays VMEM-resident
    in_specs, kernel_inputs = [], []
    if use_bn:
        in_specs += [pl.BlockSpec(gamma.shape, resident),
                     pl.BlockSpec(beta.shape, resident)]
        kernel_inputs += [gamma, beta]
    in_specs.append(pl.BlockSpec((bt, input_dim), lambda i: (i, 0)))
    kernel_inputs.append(x)
    in_specs.append(pl.BlockSpec(biases.shape, resident))
    kernel_inputs.append(biases)
    for w in weights:
        in_specs.append(pl.BlockSpec(w.shape, resident))
        kernel_inputs.append(w)
    out_spec = pl.BlockSpec((bt, out_pad), lambda i: (i, 0))

    flops = 2 * batch_pad * sum(ki * ko for ki, ko in zip(in_widths, out_widths))
    bytes_accessed = (x.size * x.dtype.itemsize + param_bytes
                      + batch_pad * out_pad * 4)
    cost = pl.CostEstimate(flops=flops,
                           transcendentals=input_dim if use_bn else 0,
                           bytes_accessed=bytes_accessed)

    out = pl.pallas_call(
        _make_mlp_kernel(n_layers, out_widths, use_bn, batch),
        out_shape=jax.ShapeDtypeStruct((batch_pad, out_pad), jnp.float32),
        grid=grid,
        in_specs=in_specs,
        out_specs=out_spec,
        compiler_params=pltpu.CompilerParams(
            dimension_semantics=("parallel",),
            vmem_limit_bytes=vmem_limit),
        cost_estimate=cost,
    )(*kernel_inputs)

    return out[:batch, :out_dim]


# --------------------------------------------------------------------------- #
# Init + reference (PyTorch-equivalent semantics, matched compute precision).
# --------------------------------------------------------------------------- #
def _init_params(key, input_dim, hidden_dims, output_dim):
    dims = [input_dim] + list(hidden_dims) + [output_dim]
    params = []
    for i in range(len(dims) - 1):
        fan_in, fan_out = dims[i], dims[i + 1]
        key, kw, kb = jax.random.split(key, 3)
        bound = 1.0 / jnp.sqrt(fan_in)
        w = jax.random.uniform(kw, (fan_in, fan_out), jnp.float32, -bound, bound)
        b = jax.random.uniform(kb, (fan_out,), jnp.float32, -bound, bound)
        params.append((w, b))
    return params


def _reference_forward(x, params, bn_params=None, compute_dtype=jnp.float32):
    h = x.astype(jnp.float32)
    if bn_params is not None:
        gamma, beta = bn_params
        mean = jnp.mean(h, axis=0, keepdims=True)
        var = jnp.mean(h * h, axis=0, keepdims=True) - mean * mean  # biased var
        h = (h - mean) * jax.lax.rsqrt(var + 1e-5) * gamma + beta
    for i, (w, b) in enumerate(params):
        h = jnp.dot(h.astype(compute_dtype), w.astype(compute_dtype),
                    preferred_element_type=jnp.float32) + b
        if i < len(params) - 1:
            h = jnp.maximum(h, 0.0)
    return h


if __name__ == "__main__":
    # SimpleMLP(input_dim=32, hidden_dim=[64, 32], output_dim=1)
    batch, input_dim, hidden_dims, output_dim = 8, 32, [64, 32], 1

    key = jax.random.PRNGKey(0)
    key, kx = jax.random.split(key)
    x = jax.random.normal(kx, (batch, input_dim), jnp.float32)
    params = _init_params(key, input_dim, hidden_dims, output_dim)

    # --- default config: require_batch_norm=False ------------------------------
    prepared = prepare_params(params, bn_params=None, param_dtype=jnp.bfloat16)
    y = jax.block_until_ready(simple_mlp_forward(x, prepared))
    y_ref = _reference_forward(x, params, None, compute_dtype=jnp.bfloat16)
    assert y.shape == (batch, output_dim), y.shape
    assert jnp.allclose(y, y_ref, atol=2e-3, rtol=2e-3), "no-BN mismatch"

    # --- require_batch_norm=True (training-mode batch stats) -------------------
    key, kg, kb = jax.random.split(key, 3)
    gamma = 1.0 + 0.1 * jax.random.normal(kg, (input_dim,), jnp.float32)
    beta = 0.1 * jax.random.normal(kb, (input_dim,), jnp.float32)
    prepared_bn = prepare_params(params, (gamma, beta), param_dtype=jnp.bfloat16)
    y_bn = jax.block_until_ready(simple_mlp_forward(x, prepared_bn))
    y_bn_ref = _reference_forward(x, params, (gamma, beta), compute_dtype=jnp.bfloat16)
    assert y_bn.shape == (batch, output_dim)
    assert jnp.allclose(y_bn, y_bn_ref, atol=2e-3, rtol=2e-3), "BN mismatch"

    # --- larger ragged batch: exercises the batch-tiled parallel grid + padding -
    key, kx2 = jax.random.split(key)
    x2 = jax.random.normal(kx2, (300, input_dim), jnp.float32)
    y2 = jax.block_until_ready(simple_mlp_forward(x2, prepared, batch_tile=256))
    y2_ref = _reference_forward(x2, params, None, compute_dtype=jnp.bfloat16)
    assert y2.shape == (300, output_dim)
    assert jnp.allclose(y2, y2_ref, atol=2e-3, rtol=2e-3), "grid mismatch"

    print("KERNEL_OK")
</pallas_src>

<mosaic_0001>
module attributes {stable_mosaic.version = 11 : i64} {
  func.func @kernel(%arg0: i32, %arg1: memref<8x32xf32, #tpu.memory_space<vmem>>, %arg2: memref<3x128xf32, #tpu.memory_space<vmem>>, %arg3: memref<32x64xbf16, #tpu.memory_space<vmem>>, %arg4: memref<64x32xbf16, #tpu.memory_space<vmem>>, %arg5: memref<32x128xbf16, #tpu.memory_space<vmem>>, %arg6: memref<8x128xf32, #tpu.memory_space<vmem>>) attributes {dimension_semantics = [#tpu.dimension_semantics<parallel>], iteration_bounds = array<i64: 1>, scalar_prefetch = 0 : i64, scratch_operands = 0 : i64, tpu.core_type = #tpu.core_type<tc>, window_params = [{transform_indices = @transform_0, window_bounds = array<i64: 8, 32>}, {pipeline_mode = #tpu.pipeline_mode<synchronous>, transform_indices = @transform_1, window_bounds = array<i64: 3, 128>}, {pipeline_mode = #tpu.pipeline_mode<synchronous>, transform_indices = @transform_2, window_bounds = array<i64: 32, 64>}, {pipeline_mode = #tpu.pipeline_mode<synchronous>, transform_indices = @transform_3, window_bounds = array<i64: 64, 32>}, {pipeline_mode = #tpu.pipeline_mode<synchronous>, transform_indices = @transform_4, window_bounds = array<i64: 32, 128>}, {transform_indices = @transform_5, window_bounds = array<i64: 8, 128>}]} {
    %c0 = arith.constant 0 : index
    %c0_0 = arith.constant 0 : index
    %0 = vector.load %arg1[%c0, %c0_0] : memref<8x32xf32, #tpu.memory_space<vmem>>, vector<8x32xf32>
    %c0_1 = arith.constant 0 : index
    %c0_2 = arith.constant 0 : index
    %1 = vector.load %arg3[%c0_1, %c0_2] : memref<32x64xbf16, #tpu.memory_space<vmem>>, vector<32x64xbf16>
    %c0_3 = arith.constant 0 : index
    %c0_4 = arith.constant 0 : index
    %2 = vector.load %arg2[%c0_3, %c0_4] : memref<3x128xf32, #tpu.memory_space<vmem>>, vector<1x64xf32>
    %3 = arith.truncf %0 : vector<8x32xf32> to vector<8x32xbf16>
    %cst = arith.constant dense<0.000000e+00> : vector<8x64xf32>
    %4 = tpu.matmul %3, %1, %cst {dimension_numbers = #tpu.dot_dimension_numbers<[1], [0], [0], [1], [0, 0, 1, 1], [], []>} : vector<8x32xbf16>, vector<32x64xbf16>, vector<8x64xf32> -> vector<8x64xf32>
    %5 = vector.broadcast %2 : vector<1x64xf32> to vector<8x64xf32>
    %6 = arith.addf %4, %5 : vector<8x64xf32>
    %cst_5 = arith.constant 0.000000e+00 : f32
    %7 = vector.broadcast %cst_5 : f32 to vector<8x64xf32>
    %8 = arith.maximumf %6, %7 : vector<8x64xf32>
    %c0_6 = arith.constant 0 : index
    %c0_7 = arith.constant 0 : index
    %9 = vector.load %arg4[%c0_6, %c0_7] : memref<64x32xbf16, #tpu.memory_space<vmem>>, vector<64x32xbf16>
    %c1 = arith.constant 1 : index
    %c0_8 = arith.constant 0 : index
    %10 = vector.load %arg2[%c1, %c0_8] : memref<3x128xf32, #tpu.memory_space<vmem>>, vector<1x32xf32>
    %11 = arith.truncf %8 : vector<8x64xf32> to vector<8x64xbf16>
    %cst_9 = arith.constant dense<0.000000e+00> : vector<8x32xf32>
    %12 = tpu.matmul %11, %9, %cst_9 {dimension_numbers = #tpu.dot_dimension_numbers<[1], [0], [0], [1], [0, 0, 1, 1], [], []>} : vector<8x64xbf16>, vector<64x32xbf16>, vector<8x32xf32> -> vector<8x32xf32>
    %13 = vector.broadcast %10 : vector<1x32xf32> to vector<8x32xf32>
    %14 = arith.addf %12, %13 : vector<8x32xf32>
    %cst_10 = arith.constant 0.000000e+00 : f32
    %15 = vector.broadcast %cst_10 : f32 to vector<8x32xf32>
    %16 = arith.maximumf %14, %15 : vector<8x32xf32>
    %c0_11 = arith.constant 0 : index
    %c0_12 = arith.constant 0 : index
    %17 = vector.load %arg5[%c0_11, %c0_12] : memref<32x128xbf16, #tpu.memory_space<vmem>>, vector<32x128xbf16>
    %c2 = arith.constant 2 : index
    %c0_13 = arith.constant 0 : index
    %18 = vector.load %arg2[%c2, %c0_13] : memref<3x128xf32, #tpu.memory_space<vmem>>, vector<1x128xf32>
    %19 = arith.truncf %16 : vector<8x32xf32> to vector<8x32xbf16>
    %cst_14 = arith.constant dense<0.000000e+00> : vector<8x128xf32>
    %20 = tpu.matmul %19, %17, %cst_14 {dimension_numbers = #tpu.dot_dimension_numbers<[1], [0], [0], [1], [0, 0, 1, 1], [], []>} : vector<8x32xbf16>, vector<32x128xbf16>, vector<8x128xf32> -> vector<8x128xf32>
    %21 = vector.broadcast %18 : vector<1x128xf32> to vector<8x128xf32>
    %22 = arith.addf %20, %21 : vector<8x128xf32>
    %c0_15 = arith.constant 0 : index
    %c0_16 = arith.constant 0 : index
    %23 = vector.load %arg6[%c0_15, %c0_16] : memref<8x128xf32, #tpu.memory_space<vmem>>, vector<8x128xf32>
    tpu.vector_store %arg6[%c0_15, %c0_16], %22 {strides = array<i32>} : memref<8x128xf32, #tpu.memory_space<vmem>>, vector<8x128xf32>,
    return
  }
  func.func @transform_0(%arg0: i32) -> (i32, i32) {
    %c0_i32 = arith.constant 0 : i32
    %c0_i32_0 = arith.constant 0 : i32
    return %arg0, %c0_i32 : i32, i32
  }
  func.func @transform_1(%arg0: i32) -> (i32, i32) {
    %c0_i32 = arith.constant 0 : i32
    %c0_i32_0 = arith.constant 0 : i32
    %c0_i32_1 = arith.constant 0 : i32
    return %c0_i32, %c0_i32_0 : i32, i32
  }
  func.func @transform_2(%arg0: i32) -> (i32, i32) {
    %c0_i32 = arith.constant 0 : i32
    %c0_i32_0 = arith.constant 0 : i32
    %c0_i32_1 = arith.constant 0 : i32
    return %c0_i32, %c0_i32_0 : i32, i32
  }
  func.func @transform_3(%arg0: i32) -> (i32, i32) {
    %c0_i32 = arith.constant 0 : i32
    %c0_i32_0 = arith.constant 0 : i32
    %c0_i32_1 = arith.constant 0 : i32
    return %c0_i32, %c0_i32_0 : i32, i32
  }
  func.func @transform_4(%arg0: i32) -> (i32, i32) {
    %c0_i32 = arith.constant 0 : i32
    %c0_i32_0 = arith.constant 0 : i32
    %c0_i32_1 = arith.constant 0 : i32
    return %c0_i32, %c0_i32_0 : i32, i32
  }
  func.func @transform_5(%arg0: i32) -> (i32, i32) {
    %c0_i32 = arith.constant 0 : i32
    %c0_i32_0 = arith.constant 0 : i32
    return %arg0, %c0_i32 : i32, i32
  }
}

</mosaic_0001>

<llo_original>
// kernel: tpu_custom_call.1
$region0: #{tpu_custom_call.1}
  #allocation0 [shape = 'u32[]', space=smem, size = 0x4, offset = 0x4, fixed_abs, tag = 'smem constant byte address 0x4 - core index']
  #allocation1 [shape = 'u32[144,128]{1,0:T(1,128)}', space=vmem, size = 0x12000, scoped, tag = 'internal scratch']
  %s0 = inlined_call_operand.vmem [shape: f32[8,32], index: 0, kind: input, shape index: {}]
  %s1 = inlined_call_operand.vmem [shape: f32[3,128], index: 1, kind: input, shape index: {}]
  %s2 = inlined_call_operand.vmem [shape: bf16[32,64], index: 2, kind: input, shape index: {}]
  %s3 = inlined_call_operand.vmem [shape: bf16[64,32], index: 3, kind: input, shape index: {}]
  %s4 = inlined_call_operand.vmem [shape: bf16[32,128], index: 4, kind: input, shape index: {}]
  %s5 = inlined_call_operand.hbm [shape: f32[8,128], index: 5, kind: output, shape index: {}]
  %s6 = sld [smem:[#allocation0]]
  $region30: #{tpu_custom_call.1} parent=0
    _
  %s8 = ssub.s32 1, %s6
  %s9 = scalar_select 0, %s8, %s6
  $region1: #{tpu_custom_call.1} parent=0
    #allocation2 [shape = 'u8[4096]{0}', space=vmem, size = 0x1000, scoped, tag = 'output window, operand 0, single buffered']
    #allocation3 [shape = 's32[1]{0}', space=sflag, size = 0x4, scoped, tag = 'scoped memory for tpu_custom_call.1']
    %10 = vsyncpa [#allocation3], 0
    // Predicated region
    $region2: #{tpu_custom_call.1} parent=1 // pred_check
      _
    $region3: #{tpu_custom_call.1} parent=1 // pred_check_branch
      %12 = sbr.rel (0) target = $region5
    $region4: #{tpu_custom_call.1} parent=1 // pred_region
      _
    $region5: #{tpu_custom_call.1} parent=1 // pred_fallthru
      _
    // Predicated region
    $region6: #{tpu_custom_call.1} parent=1 // pred_check
      _
    $region7: #{tpu_custom_call.1} parent=1 // pred_check_branch
      %14 = sbr.rel (0) target = $region9
    $region8: #{tpu_custom_call.1} parent=1 // pred_region
      _
    $region9: #{tpu_custom_call.1} parent=1 // pred_fallthru
      _
    // Predicated region
    $region10: #{tpu_custom_call.1} parent=1 // pred_check
      _
    $region11: #{tpu_custom_call.1} parent=1 // pred_check_branch
      %16 = sbr.rel (0) target = $region13
    $region12: #{tpu_custom_call.1} parent=1 // pred_region
      _
    $region13: #{tpu_custom_call.1} parent=1 // pred_fallthru
      _
    // Predicated region
    $region14: #{tpu_custom_call.1} parent=1 // pred_check
      _
    $region15: #{tpu_custom_call.1} parent=1 // pred_check_branch
      %18 = sbr.rel (0) target = $region17
    $region16: #{tpu_custom_call.1} parent=1 // pred_region
      _
    $region17: #{tpu_custom_call.1} parent=1 // pred_fallthru
      _
    // Predicated region
    $region18: #{tpu_custom_call.1} parent=1 // pred_check
      _
    $region19: #{tpu_custom_call.1} parent=1 // pred_check_branch
      %20 = sbr.rel (0) target = $region21
    $region20: #{tpu_custom_call.1} parent=1 // pred_region
      _
    $region21: #{tpu_custom_call.1} parent=1 // pred_fallthru
      _
    %v22 = vld [vmem:[%s0] sm:$0xff]
    %v23 = vld [vmem:[%s2] sm:$0xf]
    %v24 = vld [vmem:[%s2 + $0x4] sm:$0xf]
    %v25 = vld [vmem:[%s2 + $0x8] sm:$0xf]
    %v26 = vld [vmem:[%s2 + $0xc] sm:$0xf]
    %v27 = vld [vmem:[%s1] sm:$0x1]
    %v28 = vpack.c.bf16 %v22, %v22
    %v29 = vlaneseq
    %v30 = vshrl.u32 %v29, 7
    %v31 = vsub.s32 0, %v30
    %v32 = vrot.slane %v27, %v31
    %v37 = vunpack.c.l.b16 %v23
    %v38 = vunpack.c.l.b16 %v24
    %v39 = vunpack.c.l.b16 %v25
    %v40 = vunpack.c.l.b16 %v26
    %v41 = vpack.c.b16 %v38, %v37
    %v42 = vpack.c.b16 %v40, %v39
    %vm45 = vcmask 261120
    %v47 = vsel %vm45, %v28, 0
    %49 = vmatprep.subr.bf16.mxu0 0
    %50 = vmatpush1.bf16.msra.mxu0 %v41
    %51 = vmatprep.subr.bf16.mxu0 0
    %52 = vmatpush1.bf16.msra.mxu0 %v42
    %53 = vmatprep.subr.bf16.mxu0 0
    %54 = vmatpush1.bf16.msra.mxu0 0
    %55 = vmatprep.subr.bf16.mxu0 0
    %56 = vmatpush1.bf16.msra.mxu0 0
    %57 = vmatprep.subr.bf16.mxu0 0
    %58 = vmatpush1.bf16.msra.mxu0 0
    %59 = vmatprep.subr.bf16.mxu0 0
    %60 = vmatpush1.bf16.msra.mxu0 0
    %61 = vmatprep.subr.bf16.mxu0 0
    %62 = vmatpush1.bf16.msra.mxu0 0
    %63 = vmatprep.subr.bf16.mxu0 0
    %64 = vmatpush1.bf16.msra.mxu0 0
    %65 = vmatprep.subr.bf16.mxu0 0
    %66 = vmatpush1.bf16.msra.mxu0 0
    %67 = vmatprep.subr.bf16.mxu0 0
    %68 = vmatpush1.bf16.msra.mxu0 0
    %69 = vmatprep.subr.bf16.mxu0 0
    %70 = vmatpush1.bf16.msra.mxu0 0
    %71 = vmatprep.subr.bf16.mxu0 0
    %72 = vmatpush1.bf16.msra.mxu0 0
    %73 = vmatprep.subr.bf16.mxu0 0
    %74 = vmatpush1.bf16.msra.mxu0 0
    %75 = vmatprep.subr.bf16.mxu0 0
    %76 = vmatpush1.bf16.msra.mxu0 0
    %77 = vmatprep.subr.bf16.mxu0 0
    %78 = vmatpush1.bf16.msra.mxu0 0
    %79 = vmatprep.subr.bf16.mxu0 0
    %80 = vmatpush1.bf16.msra.mxu0 0
    %81 = vmatprep.mubr.bf16.mxu0 0
    %82 = vmatmul.mubr.bf16.gmra.mrb[0].mxu0 %v47
    %v83 = vpop.f32.mrb[0].mxu0
    %v84 = vadd.f32 %v32, %v83
    %v85 = vpop.f32.mrb[0].mxu0
    %v86 = vpop.f32.mrb[0].mxu0
    %v87 = vpop.f32.mrb[0].mxu0
    %88 = vdwg.mxu0
    %v89 = vmax.f32 %v84, 0.0
    %v90 = vld [vmem:[%s3] sm:$0xf]
    %v91 = vld [vmem:[%s3 + $0x4] sm:$0xf]
    %v92 = vld [vmem:[%s3 + $0x8] sm:$0xf]
    %v93 = vld [vmem:[%s3 + $0xc] sm:$0xf]
    %v94 = vld [vmem:[%s3 + $0x10] sm:$0xf]
    %v95 = vld [vmem:[%s3 + $0x14] sm:$0xf]
    %v96 = vld [vmem:[%s3 + $0x18] sm:$0xf]
    %v97 = vld [vmem:[%s3 + $0x1c] sm:$0xf]
    %v98 = vld [vmem:[%s1 + $0x1] sm:$0x1]
    %v99 = vpack.c.bf16 %v89, %v89
    %v100 = vlaneseq
    %v101 = vshrl.u32 %v100, 7
    %v102 = vsub.s32 0, %v101
    %v103 = vrot.slane %v98, %v102
    %v112 = vunpack.c.l.b16 %v90
    %v113 = vunpack.c.l.b16 %v91
    %v114 = vunpack.c.l.b16 %v92
    %v115 = vunpack.c.l.b16 %v93
    %v116 = vunpack.c.l.b16 %v94
    %v117 = vunpack.c.l.b16 %v95
    %v118 = vunpack.c.l.b16 %v96
    %v119 = vunpack.c.l.b16 %v97
    %v120 = vpack.c.b16 %v113, %v112
    %v121 = vpack.c.b16 %v115, %v114
    %v122 = vpack.c.b16 %v117, %v116
    %v123 = vpack.c.b16 %v119, %v118
    %vm128 = vcmask 523264
    %v130 = vsel %vm128, %v99, 0
    %132 = vmatprep.subr.bf16.mxu0 0
    %133 = vmatpush1.bf16.msra.mxu0 %v120
    %134 = vmatprep.subr.bf16.mxu0 0
    %135 = vmatpush1.bf16.msra.mxu0 %v121
    %136 = vmatprep.subr.bf16.mxu0 0
    %137 = vmatpush1.bf16.msra.mxu0 %v122
    %138 = vmatprep.subr.bf16.mxu0 0
    %139 = vmatpush1.bf16.msra.mxu0 %v123
    %140 = vmatprep.subr.bf16.mxu0 0
    %141 = vmatpush1.bf16.msra.mxu0 0
    %142 = vmatprep.subr.bf16.mxu0 0
    %143 = vmatpush1.bf16.msra.mxu0 0
    %144 = vmatprep.subr.bf16.mxu0 0
    %145 = vmatpush1.bf16.msra.mxu0 0
    %146 = vmatprep.subr.bf16.mxu0 0
    %147 = vmatpush1.bf16.msra.mxu0 0
    %148 = vmatprep.subr.bf16.mxu0 0
    %149 = vmatpush1.bf16.msra.mxu0 0
    %150 = vmatprep.subr.bf16.mxu0 0
    %151 = vmatpush1.bf16.msra.mxu0 0
    %152 = vmatprep.subr.bf16.mxu0 0
    %153 = vmatpush1.bf16.msra.mxu0 0
    %154 = vmatprep.subr.bf16.mxu0 0
    %155 = vmatpush1.bf16.msra.mxu0 0
    %156 = vmatprep.subr.bf16.mxu0 0
    %157 = vmatpush1.bf16.msra.mxu0 0
    %158 = vmatprep.subr.bf16.mxu0 0
    %159 = vmatpush1.bf16.msra.mxu0 0
    %160 = vmatprep.subr.bf16.mxu0 0
    %161 = vmatpush1.bf16.msra.mxu0 0
    %162 = vmatprep.subr.bf16.mxu0 0
    %163 = vmatpush1.bf16.msra.mxu0 0
    %164 = vmatprep.mubr.bf16.mxu0 0
    %165 = vmatmul.mubr.bf16.gmra.mrb[0].mxu0 %v130
    %v166 = vpop.f32.mrb[0].mxu0
    %v167 = vadd.f32 %v103, %v166
    %v168 = vpop.f32.mrb[0].mxu0
    %v169 = vpop.f32.mrb[0].mxu0
    %v170 = vpop.f32.mrb[0].mxu0
    %171 = vdwg.mxu0
    %v172 = vmax.f32 %v167, 0.0
    %v173 = vld [vmem:[%s4] sm:$0xf]
    %v174 = vld [vmem:[%s4 + $0x4] sm:$0xf]
    %v175 = vld [vmem:[%s4 + $0x8] sm:$0xf]
    %v176 = vld [vmem:[%s4 + $0xc] sm:$0xf]
    %v177 = vld [vmem:[%s1 + $0x2] sm:$0x1]
    %v178 = vpack.c.bf16 %v172, %v172
    %v179 = vlaneseq
    %v180 = vshrl.u32 %v179, 7
    %v181 = vsub.s32 0, %v180
    %v182 = vrot.slane %v177, %v181
    %v187 = vunpack.c.l.b16 %v173
    %v188 = vunpack.c.l.b16 %v174
    %v189 = vunpack.c.l.b16 %v175
    %v190 = vunpack.c.l.b16 %v176
    %v191 = vpack.c.b16 %v188, %v187
    %v192 = vpack.c.b16 %v190, %v189
    %v196 = vsel %vm45, %v178, 0
    %198 = vmatprep.subr.bf16.mxu0 0
    %199 = vmatpush1.bf16.msra.mxu0 %v191
    %200 = vmatprep.subr.bf16.mxu0 0
    %201 = vmatpush1.bf16.msra.mxu0 %v192
    %202 = vmatprep.subr.bf16.mxu0 0
    %203 = vmatpush1.bf16.msra.mxu0 0
    %204 = vmatprep.subr.bf16.mxu0 0
    %205 = vmatpush1.bf16.msra.mxu0 0
    %206 = vmatprep.subr.bf16.mxu0 0
    %207 = vmatpush1.bf16.msra.mxu0 0
    %208 = vmatprep.subr.bf16.mxu0 0
    %209 = vmatpush1.bf16.msra.mxu0 0
    %210 = vmatprep.subr.bf16.mxu0 0
    %211 = vmatpush1.bf16.msra.mxu0 0
    %212 = vmatprep.subr.bf16.mxu0 0
    %213 = vmatpush1.bf16.msra.mxu0 0
    %214 = vmatprep.subr.bf16.mxu0 0
    %215 = vmatpush1.bf16.msra.mxu0 0
    %216 = vmatprep.subr.bf16.mxu0 0
    %217 = vmatpush1.bf16.msra.mxu0 0
    %218 = vmatprep.subr.bf16.mxu0 0
    %219 = vmatpush1.bf16.msra.mxu0 0
    %220 = vmatprep.subr.bf16.mxu0 0
    %221 = vmatpush1.bf16.msra.mxu0 0
    %222 = vmatprep.subr.bf16.mxu0 0
    %223 = vmatpush1.bf16.msra.mxu0 0
    %224 = vmatprep.subr.bf16.mxu0 0
    %225 = vmatpush1.bf16.msra.mxu0 0
    %226 = vmatprep.subr.bf16.mxu0 0
    %227 = vmatpush1.bf16.msra.mxu0 0
    %228 = vmatprep.subr.bf16.mxu0 0
    %229 = vmatpush1.bf16.msra.mxu0 0
    %230 = vmatprep.mubr.bf16.mxu0 0
    %231 = vmatmul.mubr.bf16.gmra.mrb[0].mxu0 %v196
    %v232 = vpop.f32.mrb[0].mxu0
    %v233 = vadd.f32 %v182, %v232
    %v234 = vpop.f32.mrb[0].mxu0
    %v235 = vpop.f32.mrb[0].mxu0
    %v236 = vpop.f32.mrb[0].mxu0
    %237 = vdwg.mxu0
    %238 = vst [vmem:[#allocation2] sm:$0xff] %v233
    // Predicated region
    $region22: #{tpu_custom_call.1} parent=1 // pred_check
      _
    $region23: #{tpu_custom_call.1} parent=1 // pred_check_branch
      %240 = sbr.rel (0) target = $region25
    $region24: #{tpu_custom_call.1} parent=1 // pred_region
      %s242 = ssub.s32 128, 128
      %243 = vsyncadd [#allocation3], %s242
      %s245 = sshll.u32 [#allocation2], 4
      %s246 = int_to_ptr.vmem [resolvable:$true] %s245
      %248 = dma.vmem_to_hbm [thread:$0]  %s246, 128, %s5, [#allocation3]
    $region25: #{tpu_custom_call.1} parent=1 // pred_fallthru
      _
    // Predicated region
    $region26: #{tpu_custom_call.1} parent=1 // pred_check
      _
    $region27: #{tpu_custom_call.1} parent=1 // pred_check_branch
      %250 = sbr.rel (0) target = $region29
    $region28: #{tpu_custom_call.1} parent=1 // pred_region
      %251 = dma.done [#allocation3], 128
    $region29: #{tpu_custom_call.1} parent=1 // pred_fallthru
      _
    %252 = vsyncpa [#allocation3], 1

</llo_original>
